<compile_context>
chip_gen: v7x
topology: tpu7x:2x2x1
jax: 0.10.0
libtpu: 0.0.40
codegen_flags: <defaults>
</compile_context>

<pallas_src>
import functools

import numpy as np
import jax
import jax.numpy as jnp
from jax.experimental import pallas as pl
from jax.experimental.pallas import tpu as pltpu


# ----------------------------------------------------------------------------
# Constant CNOT-ring (parameter free) -- built once on host with numpy.
# Convention: qubit 0 is the LEFTMOST kron factor (most significant bit),
# matching deepquantum's U_expand().
# ----------------------------------------------------------------------------
def _np_cnot(control, target, n):
    P0 = np.array([[1, 0], [0, 0]], dtype=np.complex128)
    P1 = np.array([[0, 0], [0, 1]], dtype=np.complex128)
    X = np.array([[0, 1], [1, 0]], dtype=np.complex128)
    I2 = np.eye(2, dtype=np.complex128)
    t0 = np.array([[1.0]], dtype=np.complex128)
    t1 = np.array([[1.0]], dtype=np.complex128)
    for q in range(n):
        t0 = np.kron(t0, P0 if q == control else I2)
        t1 = np.kron(t1, P1 if q == control else (X if q == target else I2))
    return t0 + t1


@functools.lru_cache(maxsize=None)
def _ring_of_cnot_matrix(n):
    R = np.eye(2 ** n, dtype=np.complex128)
    for q in range(n):
        R = _np_cnot(q, (q + 1) % n, n) @ R       # later gates multiply on the left
    return R


@functools.lru_cache(maxsize=None)
def _ring_of_cnot_perm(n):
    """The ring-of-CNOT matrix is a basis permutation: (R @ A)[i, :] = A[perm[i], :]."""
    R = np.real(_ring_of_cnot_matrix(n))
    return tuple(int(i) for i in np.argmax(R, axis=1))


# ----------------------------------------------------------------------------
# Circuit construction (glue; tiny complex matrices, plain JAX inside the jit)
# ----------------------------------------------------------------------------
_HI = jax.lax.Precision.HIGHEST   # tiny 16x16 products: HIGHEST keeps U accurate, cost is nil


def _xyz_layer_matrix(params, n):
    """One XYZLayer (Rx,Ry,Rz per wire, params[3q:3q+3]) as a single kron of
    fused per-qubit 2x2 gates  g_q = Rz @ Ry @ Rx."""
    th = params.reshape(n, 3) * 0.5
    cx = jnp.cos(th[:, 0]).astype(jnp.complex64)
    sx = jnp.sin(th[:, 0]).astype(jnp.complex64)
    cy = jnp.cos(th[:, 1]).astype(jnp.complex64)
    sy = jnp.sin(th[:, 1]).astype(jnp.complex64)
    ez_m = jnp.exp(-1j * th[:, 2]).astype(jnp.complex64)
    ez_p = jnp.exp(1j * th[:, 2]).astype(jnp.complex64)
    zero = jnp.zeros((n,), dtype=jnp.complex64)
    j = jnp.complex64(1j)

    rx = jnp.stack([jnp.stack([cx, -j * sx], axis=-1),
                    jnp.stack([-j * sx, cx], axis=-1)], axis=-2)      # (n, 2, 2)
    ry = jnp.stack([jnp.stack([cy, -sy], axis=-1),
                    jnp.stack([sy, cy], axis=-1)], axis=-2)
    rz = jnp.stack([jnp.stack([ez_m, zero], axis=-1),
                    jnp.stack([zero, ez_p], axis=-1)], axis=-2)

    g = jnp.einsum('nab,nbc,ncd->nad', rz, ry, rx, precision=_HI)     # Rz@Ry@Rx per wire
    layer = g[0]
    for q in range(1, n):
        layer = jnp.kron(layer, g[q])                                 # wire 0 = MSB
    return layer


def build_unitary(w, n_qubits):
    """U of: XYZ(w[0:3n]), ring, XYZ(w[3n:6n]), ring, XYZ(w[6n:9n]), ring, XYZ(w[9n:12n]).
    Ring-of-CNOT applied as a precomputed row permutation (it is a permutation matrix)."""
    n = n_qubits
    perm = jnp.asarray(np.array(_ring_of_cnot_perm(n), dtype=np.int32))
    L1 = _xyz_layer_matrix(w[0 * n:3 * n], n)
    L2 = _xyz_layer_matrix(w[3 * n:6 * n], n)
    L3 = _xyz_layer_matrix(w[6 * n:9 * n], n)
    L4 = _xyz_layer_matrix(w[9 * n:12 * n], n)
    mm = functools.partial(jnp.matmul, precision=_HI)
    U = L1
    U = jnp.take(U, perm, axis=0)        # ring @ U  (row gather, no matmul)
    U = mm(L2, U)
    U = jnp.take(U, perm, axis=0)
    U = mm(L3, U)
    U = jnp.take(U, perm, axis=0)
    U = mm(L4, U)
    return U                             # (D, D) complex64


# ----------------------------------------------------------------------------
# Pallas kernel (per batch tile of TB samples, samples lane-dense):
#   Phi = M @ X2t                          (2D, TB)  f32, HIGHEST precision
#   out[0, b] = sum_j z_j * Phi[j, b]^2    (sublane reduce -> lane-dense row)
# where rows of Phi interleave Re/Im of the D output amplitudes and
# z_j = +1 for j < D, -1 otherwise (PauliZ on qubit 0, MSB).
# ----------------------------------------------------------------------------
def _qudis_kernel(m_ref, x_ref, out_ref):
    d2 = m_ref.shape[0]
    d = d2 // 2
    phi = jnp.dot(m_ref[...], x_ref[...],
                  preferred_element_type=jnp.float32,
                  precision=jax.lax.Precision.HIGHEST)        # (2D, TB)
    row = jax.lax.broadcasted_iota(jnp.int32, (d2, 1), 0)
    z = jnp.where(row < d, jnp.float32(1.0), jnp.float32(-1.0))   # (2D, 1), free on VPU
    out_ref[...] = jnp.sum(z * phi * phi, axis=0, keepdims=True)  # (1, TB), lane-dense


def _round_up(x, m):
    return ((x + m - 1) // m) * m


@functools.partial(jax.jit, static_argnums=(2,))
def q_discriminator_forward(weight, x, n_qubits, w_mul):
    """weight: (12*n_qubits,) f32; x: (B, 1, D) complex64. Returns (B, 1) f32."""
    n = n_qubits
    D = 2 ** n
    D2 = 2 * D
    assert x.ndim == 3 and x.shape[1] == 1 and x.shape[2] == D
    B = x.shape[0]

    w = weight * w_mul
    U = build_unitary(w, n)                                   # (D, D) complex64
    Ur = jnp.real(U).astype(jnp.float32)
    Ui = jnp.imag(U).astype(jnp.float32)
    # Real 2x2-block embedding of left-multiplication by U, interleaved layout:
    #   M[2i+0, 2k+0]= Ur[i,k]  M[2i+0, 2k+1]=-Ui[i,k]
    #   M[2i+1, 2k+0]= Ui[i,k]  M[2i+1, 2k+1]= Ur[i,k]
    Mt = jnp.stack([jnp.stack([Ur, -Ui], axis=-1),
                    jnp.stack([Ui, Ur], axis=-1)], axis=1).reshape(D2, D2)

    # Interleaved re/im, batch along lanes: x2t[2k+0, b]=Re(psi[b,k]), x2t[2k+1, b]=Im.
    # (XLA TPU has no zero-copy complex64->f32 bitcast view, so this is the one
    #  minimal re-layout pass of the batch.)
    psi = x[:, 0, :]                                          # (B, D) complex64
    x2t = jnp.stack([jnp.real(psi).T, jnp.imag(psi).T], axis=1)       # (D, 2, B)
    x2t = x2t.reshape(D2, B).astype(jnp.float32)              # (2D, B)

    # Batch tile: lane-dense, multiple of 128; pad the final partial tile.
    TB = min(2048, _round_up(B, 128))
    B_pad = _round_up(B, TB)
    if B_pad != B:
        x2t = jnp.pad(x2t, ((0, 0), (0, B_pad - B)))

    out = pl.pallas_call(
        _qudis_kernel,
        out_shape=jax.ShapeDtypeStruct((1, B_pad), jnp.float32),
        grid_spec=pltpu.PrefetchScalarGridSpec(
            num_scalar_prefetch=0,
            grid=(B_pad // TB,),                                # pipelined over batch tiles
            in_specs=[
                pl.BlockSpec((D2, D2), lambda i: (0, 0)),       # M: VMEM-resident, DMA'd once
                pl.BlockSpec((D2, TB), lambda i: (0, i)),       # batch tile, lane-dense
            ],
            out_specs=pl.BlockSpec((1, TB), lambda i: (0, i)),  # lane-dense output row
        ),
        compiler_params=pltpu.CompilerParams(
            dimension_semantics=("parallel",)),                 # megacore-shard on v7x
    )(Mt, x2t)

    return out[0, :B].reshape(B, 1)


# ----------------------------------------------------------------------------
# Pure-numpy (complex128) gate-by-gate reference of QuDis.forward
# ----------------------------------------------------------------------------
def _np_rx(t):
    c, s = np.cos(t / 2), np.sin(t / 2)
    return np.array([[c, -1j * s], [-1j * s, c]], dtype=np.complex128)


def _np_ry(t):
    c, s = np.cos(t / 2), np.sin(t / 2)
    return np.array([[c, -s], [s, c]], dtype=np.complex128)


def _np_rz(t):
    return np.array([[np.exp(-1j * t / 2), 0], [0, np.exp(1j * t / 2)]],
                    dtype=np.complex128)


def _np_embed(gate, wire, n):
    out = np.array([[1.0]], dtype=np.complex128)
    for q in range(n):
        out = np.kron(out, gate if q == wire else np.eye(2, dtype=np.complex128))
    return out


def _reference_forward(weight, x, n, w_mul):
    w = np.asarray(weight, dtype=np.float64) * float(w_mul)
    D = 2 ** n
    U = np.eye(D, dtype=np.complex128)

    def xyz(U, p):
        for q in range(n):
            U = _np_embed(_np_rx(p[3 * q + 0]), q, n) @ U
            U = _np_embed(_np_ry(p[3 * q + 1]), q, n) @ U
            U = _np_embed(_np_rz(p[3 * q + 2]), q, n) @ U
        return U

    def ring(U):
        for q in range(n):
            U = _np_cnot(q, (q + 1) % n, n) @ U
        return U

    U = xyz(U, w[0 * n:3 * n]); U = ring(U)
    U = xyz(U, w[3 * n:6 * n]); U = ring(U)
    U = xyz(U, w[6 * n:9 * n]); U = ring(U)
    U = xyz(U, w[9 * n:12 * n])

    psi = np.asarray(x)[:, 0, :].astype(np.complex128)        # (B, D)
    phi = psi @ U.T                                           # rows = (U psi)^T
    z = np.where(np.arange(D) < D // 2, 1.0, -1.0)
    out = np.real(np.sum(np.conj(phi) * z[None, :] * phi, axis=-1, keepdims=True))
    return out.astype(np.float32)


# ----------------------------------------------------------------------------
# Driver
# ----------------------------------------------------------------------------
if __name__ == "__main__":
    n_qubits = 4
    D = 2 ** n_qubits            # 16
    B = 2

    # nn.Parameter init: uniform(0, 2*pi) * init_std  (use_wscale, lrmul=1)
    gain = 2 ** 0.5
    lrmul = 1.0
    he_std = gain * 5 ** (-0.5)
    init_std = 1.0 / lrmul
    w_mul = he_std * lrmul

    key = jax.random.PRNGKey(0)
    k_w, k_xr, k_xi = jax.random.split(key, 3)
    weight = jax.random.uniform(
        k_w, (12 * n_qubits,), minval=0.0, maxval=2 * np.pi,
        dtype=jnp.float32) * init_std

    xr = jax.random.normal(k_xr, (B, 1, D), dtype=jnp.float32)
    xi = jax.random.normal(k_xi, (B, 1, D), dtype=jnp.float32)
    x = jax.lax.complex(xr, xi)                               # (B, 1, D) complex64
    x = x / jnp.linalg.norm(x, axis=-1, keepdims=True)        # normalized states

    out = q_discriminator_forward(weight, x, n_qubits, w_mul)
    out = jax.block_until_ready(out)
    assert out.shape == (B, 1) and out.dtype == jnp.float32

    ref = _reference_forward(np.asarray(weight), np.asarray(x), n_qubits, w_mul)
    # HIGHEST-precision kernel dot + f32 glue -> tight tolerance.
    np.testing.assert_allclose(np.asarray(out), ref, rtol=1e-4, atol=1e-4)
    print("KERNEL_OK")
</pallas_src>

<mosaic_0001>
module attributes {stable_mosaic.version = 11 : i64} {
  func.func @_qudis_kernel(%arg0: i32, %arg1: memref<32x32xf32, #tpu.memory_space<vmem>>, %arg2: memref<32x128xf32, #tpu.memory_space<vmem>>, %arg3: memref<1x128xf32, #tpu.memory_space<vmem>>) attributes {dimension_semantics = [#tpu.dimension_semantics<parallel>], iteration_bounds = array<i64: 1>, scalar_prefetch = 0 : i64, scratch_operands = 0 : i64, tpu.core_type = #tpu.core_type<tc>, window_params = [{pipeline_mode = #tpu.pipeline_mode<synchronous>, transform_indices = @transform_0, window_bounds = array<i64: 32, 32>}, {transform_indices = @transform_1, window_bounds = array<i64: 32, 128>}, {transform_indices = @transform_2, window_bounds = array<i64: 1, 128>}]} {
    %c0 = arith.constant 0 : index
    %c0_0 = arith.constant 0 : index
    %0 = vector.load %arg1[%c0, %c0_0] : memref<32x32xf32, #tpu.memory_space<vmem>>, vector<32x32xf32>
    %c0_1 = arith.constant 0 : index
    %c0_2 = arith.constant 0 : index
    %1 = vector.load %arg2[%c0_1, %c0_2] : memref<32x128xf32, #tpu.memory_space<vmem>>, vector<32x128xf32>
    %cst = arith.constant dense<0.000000e+00> : vector<32x128xf32>
    %2 = tpu.matmul %0, %1, %cst {dimension_numbers = #tpu.dot_dimension_numbers<[1], [0], [0], [1], [0, 0, 1, 1], [], []>, precision = #tpu.contract_precision<fp32>} : vector<32x32xf32>, vector<32x128xf32>, vector<32x128xf32> -> vector<32x128xf32>
    %3 = tpu.iota {dimensions = array<i32: 0>} : vector<32x1xi32>
    %c16_i32 = arith.constant 16 : i32
    %4 = vector.broadcast %c16_i32 : i32 to vector<32x1xi32>
    %5 = arith.cmpi slt, %3, %4 : vector<32x1xi32>
    %cst_3 = arith.constant 1.000000e+00 : f32
    %cst_4 = arith.constant -1.000000e+00 : f32
    %6 = vector.broadcast %cst_3 : f32 to vector<32x1xf32>
    %7 = vector.broadcast %cst_4 : f32 to vector<32x1xf32>
    %8 = arith.select %5, %6, %7 : vector<32x1xi1>, vector<32x1xf32>
    %9 = vector.broadcast %8 : vector<32x1xf32> to vector<32x128xf32>
    %10 = arith.mulf %9, %2 : vector<32x128xf32>
    %11 = arith.mulf %10, %2 : vector<32x128xf32>
    %cst_5 = arith.constant dense<0.000000e+00> : vector<128xf32>
    %12 = vector.multi_reduction <add>, %11, %cst_5 [0] : vector<32x128xf32> to vector<128xf32>
    %13 = vector.shape_cast %12 : vector<128xf32> to vector<1x128xf32>
    %c0_6 = arith.constant 0 : index
    %c0_7 = arith.constant 0 : index
    %14 = vector.load %arg3[%c0_6, %c0_7] : memref<1x128xf32, #tpu.memory_space<vmem>>, vector<1x128xf32>
    tpu.vector_store %arg3[%c0_6, %c0_7], %13 {strides = array<i32>} : memref<1x128xf32, #tpu.memory_space<vmem>>, vector<1x128xf32>,
    return
  }
  func.func @transform_0(%arg0: i32) -> (i32, i32) {
    %c0_i32 = arith.constant 0 : i32
    %c0_i32_0 = arith.constant 0 : i32
    %c0_i32_1 = arith.constant 0 : i32
    return %c0_i32, %c0_i32_0 : i32, i32
  }
  func.func @transform_1(%arg0: i32) -> (i32, i32) {
    %c0_i32 = arith.constant 0 : i32
    %c0_i32_0 = arith.constant 0 : i32
    return %c0_i32, %arg0 : i32, i32
  }
  func.func @transform_2(%arg0: i32) -> (i32, i32) {
    %c0_i32 = arith.constant 0 : i32
    %c0_i32_0 = arith.constant 0 : i32
    return %c0_i32, %arg0 : i32, i32
  }
}

</mosaic_0001>

<llo_original>
// kernel: custom-call
$region0: #{custom-call}
  %s0 = inlined_call_operand.hbm [shape: c64[2,1,16], index: 0, kind: input, shape index: {}]
  %s1 = inlined_call_operand.vmem [shape: f32[2,1,16], index: 1, kind: output, shape index: {}]
  $region1: #{custom-call} parent=0
    #allocation0 [shape = 's32[1]{0}', space=sflag, size = 0x4, scoped, tag = 'scoped memory for custom-call']
    %2 = vsyncpa [#allocation0], 0
    %s3 = sshll.u32 %s1, 4
    %s4 = int_to_ptr.vmem [resolvable:$true] %s3
    %6 = dma.hbm_to_vmem [thread:$0]  %s0, 32, %s4, [#allocation0]
    %7 = dma.done [#allocation0], 32
    %8 = vsyncpa [#allocation0], 1

// kernel: custom-call.1
$region0: #{custom-call.1}
  %s0 = inlined_call_operand.hbm [shape: c64[2,1,16], index: 0, kind: input, shape index: {}]
  %s1 = inlined_call_operand.vmem [shape: f32[2,1,16], index: 1, kind: output, shape index: {}]
  %s2 = scalar_lea.hbm %s0, 32
  $region1: #{custom-call.1} parent=0
    #allocation0 [shape = 's32[1]{0}', space=sflag, size = 0x4, scoped, tag = 'scoped memory for custom-call.1']
    %3 = vsyncpa [#allocation0], 0
    %s4 = sshll.u32 %s1, 4
    %s5 = int_to_ptr.vmem [resolvable:$true] %s4
    %7 = dma.hbm_to_vmem [thread:$0]  %s2, 32, %s5, [#allocation0]
    %8 = dma.done [#allocation0], 32
    %9 = vsyncpa [#allocation0], 1

// kernel: q_discriminator_forward.1
$region0: #{q_discriminator_forward.1}
  #allocation0 [shape = 'u32[]', space=smem, size = 0x4, offset = 0x4, fixed_abs, tag = 'smem constant byte address 0x4 - core index']
  #allocation1 [shape = 'u32[144,128]{1,0:T(1,128)}', space=vmem, size = 0x12000, scoped, tag = 'internal scratch']
  %s0 = inlined_call_operand.vmem [shape: f32[32,32], index: 0, kind: input, shape index: {}]
  %s1 = inlined_call_operand.vmem [shape: f32[32,128], index: 1, kind: input, shape index: {}]
  %s2 = inlined_call_operand.vmem [shape: f32[1,128], index: 2, kind: output, shape index: {}]
  %s3 = sld [smem:[#allocation0]]
  $region18: #{q_discriminator_forward.1} parent=0
    _
  %s5 = ssub.s32 1, %s3
  %s6 = scalar_select 0, %s5, %s3
  // Predicated region
  $region2: #{q_discriminator_forward.1} parent=0 // pred_check
    _
  $region3: #{q_discriminator_forward.1} parent=0 // pred_check_branch
    %8 = sbr.rel (0) target = $region5
  $region4: #{q_discriminator_forward.1} parent=0 // pred_region
    _
  $region5: #{q_discriminator_forward.1} parent=0 // pred_fallthru
    _
  // Predicated region
  $region6: #{q_discriminator_forward.1} parent=0 // pred_check
    _
  $region7: #{q_discriminator_forward.1} parent=0 // pred_check_branch
    %10 = sbr.rel (0) target = $region9
  $region8: #{q_discriminator_forward.1} parent=0 // pred_region
    _
  $region9: #{q_discriminator_forward.1} parent=0 // pred_fallthru
    _
  %v11 = vld [vmem:[%s0] sm:$0xff]
  %v12 = vld [vmem:[%s0 + $0x8] sm:$0xff]
  %v13 = vld [vmem:[%s0 + $0x10] sm:$0xff]
  %v14 = vld [vmem:[%s0 + $0x18] sm:$0xff]
  %v15 = vld [vmem:[%s1] sm:$0xff]
  %v16 = vld [vmem:[%s1 + $0x8] sm:$0xff]
  %v17 = vld [vmem:[%s1 + $0x10] sm:$0xff]
  %v18 = vld [vmem:[%s1 + $0x18] sm:$0xff]
  %vm19 = vcmask 261120
  %v21 = vsel %vm19, %v11, 0
  %v24 = vsel %vm19, %v12, 0
  %v27 = vsel %vm19, %v13, 0
  %v30 = vsel %vm19, %v14, 0
  %32 = vmatprep.subr.mxu0 0.0
  %v33 = vand.u32 %v15, 4294901760
  %34 = vmatpush1.msra.mxu0 %v33
  %35 = vmatprep.subr.mxu0 0.0
  %v36 = vand.u32 %v16, 4294901760
  %37 = vmatpush1.msra.mxu0 %v36
  %38 = vmatprep.subr.mxu0 0.0
  %v39 = vand.u32 %v17, 4294901760
  %40 = vmatpush1.msra.mxu0 %v39
  %41 = vmatprep.subr.mxu0 0.0
  %v42 = vand.u32 %v18, 4294901760
  %43 = vmatpush1.msra.mxu0 %v42
  %44 = vmatprep.subr.mxu0 0.0
  %45 = vmatpush1.msra.mxu0 0.0
  %46 = vmatprep.subr.mxu0 0.0
  %47 = vmatpush1.msra.mxu0 0.0
  %48 = vmatprep.subr.mxu0 0.0
  %49 = vmatpush1.msra.mxu0 0.0
  %50 = vmatprep.subr.mxu0 0.0
  %51 = vmatpush1.msra.mxu0 0.0
  %52 = vmatprep.subr.mxu0 0.0
  %53 = vmatpush1.msra.mxu0 0.0
  %54 = vmatprep.subr.mxu0 0.0
  %55 = vmatpush1.msra.mxu0 0.0
  %56 = vmatprep.subr.mxu0 0.0
  %57 = vmatpush1.msra.mxu0 0.0
  %58 = vmatprep.subr.mxu0 0.0
  %59 = vmatpush1.msra.mxu0 0.0
  %60 = vmatprep.subr.mxu0 0.0
  %61 = vmatpush1.msra.mxu0 0.0
  %62 = vmatprep.subr.mxu0 0.0
  %63 = vmatpush1.msra.mxu0 0.0
  %64 = vmatprep.subr.mxu0 0.0
  %65 = vmatpush1.msra.mxu0 0.0
  %66 = vmatprep.subr.mxu0 0.0
  %67 = vmatpush1.msra.mxu0 0.0
  %68 = vmatprep.subr.mxu0 0.0
  %69 = vmatpush1.msra.mxu0 0.0
  %70 = vmatprep.subr.mxu0 0.0
  %71 = vmatpush1.msra.mxu0 0.0
  %72 = vmatprep.subr.mxu0 0.0
  %73 = vmatpush1.msra.mxu0 0.0
  %74 = vmatprep.subr.mxu0 0.0
  %75 = vmatpush1.msra.mxu0 0.0
  %76 = vmatprep.subr.mxu0 0.0
  %77 = vmatpush1.msra.mxu0 0.0
  %78 = vmatprep.subr.mxu0 0.0
  %79 = vmatpush1.msra.mxu0 0.0
  %80 = vmatprep.subr.mxu0 0.0
  %81 = vmatpush1.msra.mxu0 0.0
  %82 = vmatprep.subr.mxu0 0.0
  %83 = vmatpush1.msra.mxu0 0.0
  %84 = vmatprep.subr.mxu0 0.0
  %85 = vmatpush1.msra.mxu0 0.0
  %86 = vmatprep.subr.mxu0 0.0
  %87 = vmatpush1.msra.mxu0 0.0
  %88 = vmatprep.subr.mxu0 0.0
  %89 = vmatpush1.msra.mxu0 0.0
  %90 = vmatprep.subr.mxu0 0.0
  %91 = vmatpush1.msra.mxu0 0.0
  %92 = vmatprep.subr.mxu0 0.0
  %93 = vmatpush1.msra.mxu0 0.0
  %94 = vmatprep.subr.mxu0 0.0
  %95 = vmatpush1.msra.mxu0 0.0
  %96 = vmatprep.subr.mxu0 0.0
  %97 = vmatpush1.msra.mxu0 0.0
  %98 = vmatprep.subr.mxu0 0.0
  %99 = vmatpush1.msra.mxu0 0.0
  %100 = vmatprep.mubr.f32.mxu0 0.0
  %v101 = vand.u32 %v21, 4294901760
  %v102 = vsub.f32 %v21, %v101
  %v103 = vand.u32 %v102, 4294901760
  %v104 = vsub.f32 %v102, %v103
  %v105 = vand.u32 %v104, 4294901760
  %106 = vmatmul.mubr.f32.gmra.mrb[0].mxu0 %v105
  %v107 = vpop.f32.mrb[0].mxu0
  %v108 = vadd.f32 0.0, %v107
  %v109 = vpop.f32.mrb[0].mxu0
  %110 = vmatprep.mubr.f32.mxu0 0.0
  %v111 = vand.u32 %v24, 4294901760
  %v112 = vsub.f32 %v24, %v111
  %v113 = vand.u32 %v112, 4294901760
  %v114 = vsub.f32 %v112, %v113
  %v115 = vand.u32 %v114, 4294901760
  %116 = vmatmul.mubr.f32.gmra.mrb[0].mxu0 %v115
  %v117 = vpop.f32.mrb[0].mxu0
  %v118 = vadd.f32 0.0, %v117
  %v119 = vpop.f32.mrb[0].mxu0
  %120 = vmatprep.mubr.f32.mxu0 0.0
  %v121 = vand.u32 %v27, 4294901760
  %v122 = vsub.f32 %v27, %v121
  %v123 = vand.u32 %v122, 4294901760
  %v124 = vsub.f32 %v122, %v123
  %v125 = vand.u32 %v124, 4294901760
  %126 = vmatmul.mubr.f32.gmra.mrb[0].mxu0 %v125
  %v127 = vpop.f32.mrb[0].mxu0
  %v128 = vadd.f32 0.0, %v127
  %v129 = vpop.f32.mrb[0].mxu0
  %130 = vmatprep.mubr.f32.mxu0 0.0
  %v131 = vand.u32 %v30, 4294901760
  %v132 = vsub.f32 %v30, %v131
  %v133 = vand.u32 %v132, 4294901760
  %v134 = vsub.f32 %v132, %v133
  %v135 = vand.u32 %v134, 4294901760
  %136 = vmatmul.mubr.f32.gmra.mrb[0].mxu0 %v135
  %v137 = vpop.f32.mrb[0].mxu0
  %v138 = vadd.f32 0.0, %v137
  %v139 = vpop.f32.mrb[0].mxu0
  %140 = vdwg.mxu0
  %141 = vmatprep.subr.mxu0 0.0
  %v142 = vand.u32 %v15, 4294901760
  %v143 = vsub.f32 %v15, %v142
  %v144 = vand.u32 %v143, 4294901760
  %v145 = vsub.f32 %v143, %v144
  %v146 = vand.u32 %v145, 4294901760
  %147 = vmatpush1.msra.mxu0 %v146
  %148 = vmatprep.subr.mxu0 0.0
  %v149 = vand.u32 %v16, 4294901760
  %v150 = vsub.f32 %v16, %v149
  %v151 = vand.u32 %v150, 4294901760
  %v152 = vsub.f32 %v150, %v151
  %v153 = vand.u32 %v152, 4294901760
  %154 = vmatpush1.msra.mxu0 %v153
  %155 = vmatprep.subr.mxu0 0.0
  %v156 = vand.u32 %v17, 4294901760
  %v157 = vsub.f32 %v17, %v156
  %v158 = vand.u32 %v157, 4294901760
  %v159 = vsub.f32 %v157, %v158
  %v160 = vand.u32 %v159, 4294901760
  %161 = vmatpush1.msra.mxu0 %v160
  %162 = vmatprep.subr.mxu0 0.0
  %v163 = vand.u32 %v18, 4294901760
  %v164 = vsub.f32 %v18, %v163
  %v165 = vand.u32 %v164, 4294901760
  %v166 = vsub.f32 %v164, %v165
  %v167 = vand.u32 %v166, 4294901760
  %168 = vmatpush1.msra.mxu0 %v167
  %169 = vmatprep.subr.mxu0 0.0
  %170 = vmatpush1.msra.mxu0 0.0
  %171 = vmatprep.subr.mxu0 0.0
  %172 = vmatpush1.msra.mxu0 0.0
  %173 = vmatprep.subr.mxu0 0.0
  %174 = vmatpush1.msra.mxu0 0.0
  %175 = vmatprep.subr.mxu0 0.0
  %176 = vmatpush1.msra.mxu0 0.0
  %177 = vmatprep.subr.mxu0 0.0
  %178 = vmatpush1.msra.mxu0 0.0
  %179 = vmatprep.subr.mxu0 0.0
  %180 = vmatpush1.msra.mxu0 0.0
  %181 = vmatprep.subr.mxu0 0.0
  %182 = vmatpush1.msra.mxu0 0.0
  %183 = vmatprep.subr.mxu0 0.0
  %184 = vmatpush1.msra.mxu0 0.0
  %185 = vmatprep.subr.mxu0 0.0
  %186 = vmatpush1.msra.mxu0 0.0
  %187 = vmatprep.subr.mxu0 0.0
  %188 = vmatpush1.msra.mxu0 0.0
  %189 = vmatprep.subr.mxu0 0.0
  %190 = vmatpush1.msra.mxu0 0.0
  %191 = vmatprep.subr.mxu0 0.0
  %192 = vmatpush1.msra.mxu0 0.0
  %193 = vmatprep.subr.mxu0 0.0
  %194 = vmatpush1.msra.mxu0 0.0
  %195 = vmatprep.subr.mxu0 0.0
  %196 = vmatpush1.msra.mxu0 0.0
  %197 = vmatprep.subr.mxu0 0.0
  %198 = vmatpush1.msra.mxu0 0.0
  %199 = vmatprep.subr.mxu0 0.0
  %200 = vmatpush1.msra.mxu0 0.0
  %201 = vmatprep.subr.mxu0 0.0
  %202 = vmatpush1.msra.mxu0 0.0
  %203 = vmatprep.subr.mxu0 0.0
  %204 = vmatpush1.msra.mxu0 0.0
  %205 = vmatprep.subr.mxu0 0.0
  %206 = vmatpush1.msra.mxu0 0.0
  %207 = vmatprep.subr.mxu0 0.0
  %208 = vmatpush1.msra.mxu0 0.0
  %209 = vmatprep.subr.mxu0 0.0
  %210 = vmatpush1.msra.mxu0 0.0
  %211 = vmatprep.subr.mxu0 0.0
  %212 = vmatpush1.msra.mxu0 0.0
  %213 = vmatprep.subr.mxu0 0.0
  %214 = vmatpush1.msra.mxu0 0.0
  %215 = vmatprep.subr.mxu0 0.0
  %216 = vmatpush1.msra.mxu0 0.0
  %217 = vmatprep.subr.mxu0 0.0
  %218 = vmatpush1.msra.mxu0 0.0
  %219 = vmatprep.subr.mxu0 0.0
  %220 = vmatpush1.msra.mxu0 0.0
  %221 = vmatprep.subr.mxu0 0.0
  %222 = vmatpush1.msra.mxu0 0.0
  %223 = vmatprep.subr.mxu0 0.0
  %224 = vmatpush1.msra.mxu0 0.0
  %225 = vmatprep.mubr.f32.mxu0 0.0
  %v226 = vand.u32 %v21, 4294901760
  %227 = vmatmul.mubr.f32.gmra.mrb[0].mxu0 %v226
  %v228 = vpop.f32.mrb[0].mxu0
  %v229 = vadd.f32 %v108, %v228
  %v230 = vpop.f32.mrb[0].mxu0
  %231 = vmatprep.mubr.f32.mxu0 0.0
  %v232 = vand.u32 %v24, 4294901760
  %233 = vmatmul.mubr.f32.gmra.mrb[0].mxu0 %v232
  %v234 = vpop.f32.mrb[0].mxu0
  %v235 = vadd.f32 %v118, %v234
  %v236 = vpop.f32.mrb[0].mxu0
  %237 = vmatprep.mubr.f32.mxu0 0.0
  %v238 = vand.u32 %v27, 4294901760
  %239 = vmatmul.mubr.f32.gmra.mrb[0].mxu0 %v238
  %v240 = vpop.f32.mrb[0].mxu0
  %v241 = vadd.f32 %v128, %v240
  %v242 = vpop.f32.mrb[0].mxu0
  %243 = vmatprep.mubr.f32.mxu0 0.0
  %v244 = vand.u32 %v30, 4294901760
  %245 = vmatmul.mubr.f32.gmra.mrb[0].mxu0 %v244
  %v246 = vpop.f32.mrb[0].mxu0
  %v247 = vadd.f32 %v138, %v246
  %v248 = vpop.f32.mrb[0].mxu0
  %249 = vdwg.mxu0
  %250 = vmatprep.subr.mxu0 0.0
  %v251 = vand.u32 %v15, 4294901760
  %v252 = vsub.f32 %v15, %v251
  %253 = vmatpush1.msra.mxu0 %v252
  %254 = vmatprep.subr.mxu0 0.0
  %v255 = vand.u32 %v16, 4294901760
  %v256 = vsub.f32 %v16, %v255
  %257 = vmatpush1.msra.mxu0 %v256
  %258 = vmatprep.subr.mxu0 0.0
  %v259 = vand.u32 %v17, 4294901760
  %v260 = vsub.f32 %v17, %v259
  %261 = vmatpush1.msra.mxu0 %v260
  %262 = vmatprep.subr.mxu0 0.0
  %v263 = vand.u32 %v18, 4294901760
  %v264 = vsub.f32 %v18, %v263
  %265 = vmatpush1.msra.mxu0 %v264
  %266 = vmatprep.subr.mxu0 0.0
  %267 = vmatpush1.msra.mxu0 0.0
  %268 = vmatprep.subr.mxu0 0.0
  %269 = vmatpush1.msra.mxu0 0.0
  %270 = vmatprep.subr.mxu0 0.0
  %271 = vmatpush1.msra.mxu0 0.0
  %272 = vmatprep.subr.mxu0 0.0
  %273 = vmatpush1.msra.mxu0 0.0
  %274 = vmatprep.subr.mxu0 0.0
  %275 = vmatpush1.msra.mxu0 0.0
  %276 = vmatprep.subr.mxu0 0.0
  %277 = vmatpush1.msra.mxu0 0.0
  %278 = vmatprep.subr.mxu0 0.0
  %279 = vmatpush1.msra.mxu0 0.0
  %280 = vmatprep.subr.mxu0 0.0
  %281 = vmatpush1.msra.mxu0 0.0
  %282 = vmatprep.subr.mxu0 0.0
  %283 = vmatpush1.msra.mxu0 0.0
  %284 = vmatprep.subr.mxu0 0.0
  %285 = vmatpush1.msra.mxu0 0.0
  %286 = vmatprep.subr.mxu0 0.0
  %287 = vmatpush1.msra.mxu0 0.0
  %288 = vmatprep.subr.mxu0 0.0
  %289 = vmatpush1.msra.mxu0 0.0
  %290 = vmatprep.subr.mxu0 0.0
  %291 = vmatpush1.msra.mxu0 0.0
  %292 = vmatprep.subr.mxu0 0.0
  %293 = vmatpush1.msra.mxu0 0.0
  %294 = vmatprep.subr.mxu0 0.0
  %295 = vmatpush1.msra.mxu0 0.0
  %296 = vmatprep.subr.mxu0 0.0
  %297 = vmatpush1.msra.mxu0 0.0
  %298 = vmatprep.subr.mxu0 0.0
  %299 = vmatpush1.msra.mxu0 0.0
  %300 = vmatprep.subr.mxu0 0.0
  %301 = vmatpush1.msra.mxu0 0.0
  %302 = vmatprep.subr.mxu0 0.0
  %303 = vmatpush1.msra.mxu0 0.0
  %304 = vmatprep.subr.mxu0 0.0
  %305 = vmatpush1.msra.mxu0 0.0
  %306 = vmatprep.subr.mxu0 0.0
  %307 = vmatpush1.msra.mxu0 0.0
  %308 = vmatprep.subr.mxu0 0.0
  %309 = vmatpush1.msra.mxu0 0.0
  %310 = vmatprep.subr.mxu0 0.0
  %311 = vmatpush1.msra.mxu0 0.0
  %312 = vmatprep.subr.mxu0 0.0
  %313 = vmatpush1.msra.mxu0 0.0
  %314 = vmatprep.subr.mxu0 0.0
  %315 = vmatpush1.msra.mxu0 0.0
  %316 = vmatprep.subr.mxu0 0.0
  %317 = vmatpush1.msra.mxu0 0.0
  %318 = vmatprep.subr.mxu0 0.0
  %319 = vmatpush1.msra.mxu0 0.0
  %320 = vmatprep.subr.mxu0 0.0
  %321 = vmatpush1.msra.mxu0 0.0
  %322 = vmatprep.mubr.f32.mxu0 0.0
  %v323 = vand.u32 %v21, 4294901760
  %v324 = vsub.f32 %v21, %v323
  %325 = vmatmul.mubr.f32.gmra.mrb[0].mxu0 %v324
  %v326 = vpop.f32.mrb[0].mxu0
  %v327 = vadd.f32 %v229, %v326
  %v328 = vpop.f32.mrb[0].mxu0
  %329 = vmatprep.mubr.f32.mxu0 0.0
  %v330 = vand.u32 %v24, 4294901760
  %v331 = vsub.f32 %v24, %v330
  %332 = vmatmul.mubr.f32.gmra.mrb[0].mxu0 %v331
  %v333 = vpop.f32.mrb[0].mxu0
  %v334 = vadd.f32 %v235, %v333
  %v335 = vpop.f32.mrb[0].mxu0
  %336 = vmatprep.mubr.f32.mxu0 0.0
  %v337 = vand.u32 %v27, 4294901760
  %v338 = vsub.f32 %v27, %v337
  %339 = vmatmul.mubr.f32.gmra.mrb[0].mxu0 %v338
  %v340 = vpop.f32.mrb[0].mxu0
  %v341 = vadd.f32 %v241, %v340
  %v342 = vpop.f32.mrb[0].mxu0
  %343 = vmatprep.mubr.f32.mxu0 0.0
  %v344 = vand.u32 %v30, 4294901760
  %v345 = vsub.f32 %v30, %v344
  %346 = vmatmul.mubr.f32.gmra.mrb[0].mxu0 %v345
  %v347 = vpop.f32.mrb[0].mxu0
  %v348 = vadd.f32 %v247, %v347
  %v349 = vpop.f32.mrb[0].mxu0
  %350 = vdwg.mxu0
  %351 = vmatprep.subr.mxu0 0.0
  %v352 = vand.u32 %v15, 4294901760
  %353 = vmatpush1.msra.mxu0 %v352
  %354 = vmatprep.subr.mxu0 0.0
  %v355 = vand.u32 %v16, 4294901760
  %356 = vmatpush1.msra.mxu0 %v355
  %357 = vmatprep.subr.mxu0 0.0
  %v358 = vand.u32 %v17, 4294901760
  %359 = vmatpush1.msra.mxu0 %v358
  %360 = vmatprep.subr.mxu0 0.0
  %v361 = vand.u32 %v18, 4294901760
  %362 = vmatpush1.msra.mxu0 %v361
  %363 = vmatprep.subr.mxu0 0.0
  %364 = vmatpush1.msra.mxu0 0.0
  %365 = vmatprep.subr.mxu0 0.0
  %366 = vmatpush1.msra.mxu0 0.0
  %367 = vmatprep.subr.mxu0 0.0
  %368 = vmatpush1.msra.mxu0 0.0
  %369 = vmatprep.subr.mxu0 0.0
  %370 = vmatpush1.msra.mxu0 0.0
  %371 = vmatprep.subr.mxu0 0.0
  %372 = vmatpush1.msra.mxu0 0.0
  %373 = vmatprep.subr.mxu0 0.0
  %374 = vmatpush1.msra.mxu0 0.0
  %375 = vmatprep.subr.mxu0 0.0
  %376 = vmatpush1.msra.mxu0 0.0
  %377 = vmatprep.subr.mxu0 0.0
  %378 = vmatpush1.msra.mxu0 0.0
  %379 = vmatprep.subr.mxu0 0.0
  %380 = vmatpush1.msra.mxu0 0.0
  %381 = vmatprep.subr.mxu0 0.0
  %382 = vmatpush1.msra.mxu0 0.0
  %383 = vmatprep.subr.mxu0 0.0
  %384 = vmatpush1.msra.mxu0 0.0
  %385 = vmatprep.subr.mxu0 0.0
  %386 = vmatpush1.msra.mxu0 0.0
  %387 = vmatprep.subr.mxu0 0.0
  %388 = vmatpush1.msra.mxu0 0.0
  %389 = vmatprep.subr.mxu0 0.0
  %390 = vmatpush1.msra.mxu0 0.0
  %391 = vmatprep.subr.mxu0 0.0
  %392 = vmatpush1.msra.mxu0 0.0
  %393 = vmatprep.subr.mxu0 0.0
  %394 = vmatpush1.msra.mxu0 0.0
  %395 = vmatprep.subr.mxu0 0.0
  %396 = vmatpush1.msra.mxu0 0.0
  %397 = vmatprep.subr.mxu0 0.0
  %398 = vmatpush1.msra.mxu0 0.0
  %399 = vmatprep.subr.mxu0 0.0
  %400 = vmatpush1.msra.mxu0 0.0
  %401 = vmatprep.subr.mxu0 0.0
  %402 = vmatpush1.msra.mxu0 0.0
  %403 = vmatprep.subr.mxu0 0.0
  %404 = vmatpush1.msra.mxu0 0.0
  %405 = vmatprep.subr.mxu0 0.0
  %406 = vmatpush1.msra.mxu0 0.0
  %407 = vmatprep.subr.mxu0 0.0
  %408 = vmatpush1.msra.mxu0 0.0
  %409 = vmatprep.subr.mxu0 0.0
  %410 = vmatpush1.msra.mxu0 0.0
  %411 = vmatprep.subr.mxu0 0.0
  %412 = vmatpush1.msra.mxu0 0.0
  %413 = vmatprep.subr.mxu0 0.0
  %414 = vmatpush1.msra.mxu0 0.0
  %415 = vmatprep.subr.mxu0 0.0
  %416 = vmatpush1.msra.mxu0 0.0
  %417 = vmatprep.subr.mxu0 0.0
  %418 = vmatpush1.msra.mxu0 0.0
  %419 = vmatprep.mubr.f32.mxu0 0.0
  %v420 = vand.u32 %v21, 4294901760
  %v421 = vsub.f32 %v21, %v420
  %v422 = vand.u32 %v421, 4294901760
  %423 = vmatmul.mubr.f32.gmra.mrb[0].mxu0 %v422
  %v424 = vpop.f32.mrb[0].mxu0
  %v425 = vadd.f32 %v327, %v424
  %v426 = vpop.f32.mrb[0].mxu0
  %427 = vmatprep.mubr.f32.mxu0 0.0
  %v428 = vand.u32 %v24, 4294901760
  %v429 = vsub.f32 %v24, %v428
  %v430 = vand.u32 %v429, 4294901760
  %431 = vmatmul.mubr.f32.gmra.mrb[0].mxu0 %v430
  %v432 = vpop.f32.mrb[0].mxu0
  %v433 = vadd.f32 %v334, %v432
  %v434 = vpop.f32.mrb[0].mxu0
  %435 = vmatprep.mubr.f32.mxu0 0.0
  %v436 = vand.u32 %v27, 4294901760
  %v437 = vsub.f32 %v27, %v436
  %v438 = vand.u32 %v437, 4294901760
  %439 = vmatmul.mubr.f32.gmra.mrb[0].mxu0 %v438
  %v440 = vpop.f32.mrb[0].mxu0
  %v441 = vadd.f32 %v341, %v440
  %v442 = vpop.f32.mrb[0].mxu0
  %443 = vmatprep.mubr.f32.mxu0 0.0
  %v444 = vand.u32 %v30, 4294901760
  %v445 = vsub.f32 %v30, %v444
  %v446 = vand.u32 %v445, 4294901760
  %447 = vmatmul.mubr.f32.gmra.mrb[0].mxu0 %v446
  %v448 = vpop.f32.mrb[0].mxu0
  %v449 = vadd.f32 %v348, %v448
  %v450 = vpop.f32.mrb[0].mxu0
  %451 = vdwg.mxu0
  %452 = vmatprep.subr.mxu0 0.0
  %v453 = vand.u32 %v15, 4294901760
  %v454 = vsub.f32 %v15, %v453
  %v455 = vand.u32 %v454, 4294901760
  %456 = vmatpush1.msra.mxu0 %v455
  %457 = vmatprep.subr.mxu0 0.0
  %v458 = vand.u32 %v16, 4294901760
  %v459 = vsub.f32 %v16, %v458
  %v460 = vand.u32 %v459, 4294901760
  %461 = vmatpush1.msra.mxu0 %v460
  %462 = vmatprep.subr.mxu0 0.0
  %v463 = vand.u32 %v17, 4294901760
  %v464 = vsub.f32 %v17, %v463
  %v465 = vand.u32 %v464, 4294901760
  %466 = vmatpush1.msra.mxu0 %v465
  %467 = vmatprep.subr.mxu0 0.0
  %v468 = vand.u32 %v18, 4294901760
  %v469 = vsub.f32 %v18, %v468
  %v470 = vand.u32 %v469, 4294901760
  %471 = vmatpush1.msra.mxu0 %v470
  %472 = vmatprep.subr.mxu0 0.0
  %473 = vmatpush1.msra.mxu0 0.0
  %474 = vmatprep.subr.mxu0 0.0
  %475 = vmatpush1.msra.mxu0 0.0
  %476 = vmatprep.subr.mxu0 0.0
  %477 = vmatpush1.msra.mxu0 0.0
  %478 = vmatprep.subr.mxu0 0.0
  %479 = vmatpush1.msra.mxu0 0.0
  %480 = vmatprep.subr.mxu0 0.0
  %481 = vmatpush1.msra.mxu0 0.0
  %482 = vmatprep.subr.mxu0 0.0
  %483 = vmatpush1.msra.mxu0 0.0
  %484 = vmatprep.subr.mxu0 0.0
  %485 = vmatpush1.msra.mxu0 0.0
  %486 = vmatprep.subr.mxu0 0.0
  %487 = vmatpush1.msra.mxu0 0.0
  %488 = vmatprep.subr.mxu0 0.0
  %489 = vmatpush1.msra.mxu0 0.0
  %490 = vmatprep.subr.mxu0 0.0
  %491 = vmatpush1.msra.mxu0 0.0
  %492 = vmatprep.subr.mxu0 0.0
  %493 = vmatpush1.msra.mxu0 0.0
  %494 = vmatprep.subr.mxu0 0.0
  %495 = vmatpush1.msra.mxu0 0.0
  %496 = vmatprep.subr.mxu0 0.0
  %497 = vmatpush1.msra.mxu0 0.0
  %498 = vmatprep.subr.mxu0 0.0
  %499 = vmatpush1.msra.mxu0 0.0
  %500 = vmatprep.subr.mxu0 0.0
  %501 = vmatpush1.msra.mxu0 0.0
  %502 = vmatprep.subr.mxu0 0.0
  %503 = vmatpush1.msra.mxu0 0.0
  %504 = vmatprep.subr.mxu0 0.0
  %505 = vmatpush1.msra.mxu0 0.0
  %506 = vmatprep.subr.mxu0 0.0
  %507 = vmatpush1.msra.mxu0 0.0
  %508 = vmatprep.subr.mxu0 0.0
  %509 = vmatpush1.msra.mxu0 0.0
  %510 = vmatprep.subr.mxu0 0.0
  %511 = vmatpush1.msra.mxu0 0.0
  %512 = vmatprep.subr.mxu0 0.0
  %513 = vmatpush1.msra.mxu0 0.0
  %514 = vmatprep.subr.mxu0 0.0
  %515 = vmatpush1.msra.mxu0 0.0
  %516 = vmatprep.subr.mxu0 0.0
  %517 = vmatpush1.msra.mxu0 0.0
  %518 = vmatprep.subr.mxu0 0.0
  %519 = vmatpush1.msra.mxu0 0.0
  %520 = vmatprep.subr.mxu0 0.0
  %521 = vmatpush1.msra.mxu0 0.0
  %522 = vmatprep.subr.mxu0 0.0
  %523 = vmatpush1.msra.mxu0 0.0
  %524 = vmatprep.subr.mxu0 0.0
  %525 = vmatpush1.msra.mxu0 0.0
  %526 = vmatprep.subr.mxu0 0.0
  %527 = vmatpush1.msra.mxu0 0.0
  %528 = vmatprep.mubr.f32.mxu0 0.0
  %v529 = vand.u32 %v21, 4294901760
  %530 = vmatmul.mubr.f32.gmra.mrb[0].mxu0 %v529
  %v531 = vpop.f32.mrb[0].mxu0
  %v532 = vadd.f32 %v425, %v531
  %v533 = vpop.f32.mrb[0].mxu0
  %534 = vmatprep.mubr.f32.mxu0 0.0
  %v535 = vand.u32 %v24, 4294901760
  %536 = vmatmul.mubr.f32.gmra.mrb[0].mxu0 %v535
  %v537 = vpop.f32.mrb[0].mxu0
  %v538 = vadd.f32 %v433, %v537
  %v539 = vpop.f32.mrb[0].mxu0
  %540 = vmatprep.mubr.f32.mxu0 0.0
  %v541 = vand.u32 %v27, 4294901760
  %542 = vmatmul.mubr.f32.gmra.mrb[0].mxu0 %v541
  %v543 = vpop.f32.mrb[0].mxu0
  %v544 = vadd.f32 %v441, %v543
  %v545 = vpop.f32.mrb[0].mxu0
  %546 = vmatprep.mubr.f32.mxu0 0.0
  %v547 = vand.u32 %v30, 4294901760
  %548 = vmatmul.mubr.f32.gmra.mrb[0].mxu0 %v547
  %v549 = vpop.f32.mrb[0].mxu0
  %v550 = vadd.f32 %v449, %v549
  %v551 = vpop.f32.mrb[0].mxu0
  %552 = vdwg.mxu0
  %553 = vmatprep.subr.mxu0 0.0
  %v554 = vand.u32 %v15, 4294901760
  %555 = vmatpush1.msra.mxu0 %v554
  %556 = vmatprep.subr.mxu0 0.0
  %v557 = vand.u32 %v16, 4294901760
  %558 = vmatpush1.msra.mxu0 %v557
  %559 = vmatprep.subr.mxu0 0.0
  %v560 = vand.u32 %v17, 4294901760
  %561 = vmatpush1.msra.mxu0 %v560
  %562 = vmatprep.subr.mxu0 0.0
  %v563 = vand.u32 %v18, 4294901760
  %564 = vmatpush1.msra.mxu0 %v563
  %565 = vmatprep.subr.mxu0 0.0
  %566 = vmatpush1.msra.mxu0 0.0
  %567 = vmatprep.subr.mxu0 0.0
  %568 = vmatpush1.msra.mxu0 0.0
  %569 = vmatprep.subr.mxu0 0.0
  %570 = vmatpush1.msra.mxu0 0.0
  %571 = vmatprep.subr.mxu0 0.0
  %572 = vmatpush1.msra.mxu0 0.0
  %573 = vmatprep.subr.mxu0 0.0
  %574 = vmatpush1.msra.mxu0 0.0
  %575 = vmatprep.subr.mxu0 0.0
  %576 = vmatpush1.msra.mxu0 0.0
  %577 = vmatprep.subr.mxu0 0.0
  %578 = vmatpush1.msra.mxu0 0.0
  %579 = vmatprep.subr.mxu0 0.0
  %580 = vmatpush1.msra.mxu0 0.0
  %581 = vmatprep.subr.mxu0 0.0
  %582 = vmatpush1.msra.mxu0 0.0
  %583 = vmatprep.subr.mxu0 0.0
  %584 = vmatpush1.msra.mxu0 0.0
  %585 = vmatprep.subr.mxu0 0.0
  %586 = vmatpush1.msra.mxu0 0.0
  %587 = vmatprep.subr.mxu0 0.0
  %588 = vmatpush1.msra.mxu0 0.0
  %589 = vmatprep.subr.mxu0 0.0
  %590 = vmatpush1.msra.mxu0 0.0
  %591 = vmatprep.subr.mxu0 0.0
  %592 = vmatpush1.msra.mxu0 0.0
  %593 = vmatprep.subr.mxu0 0.0
  %594 = vmatpush1.msra.mxu0 0.0
  %595 = vmatprep.subr.mxu0 0.0
  %596 = vmatpush1.msra.mxu0 0.0
  %597 = vmatprep.subr.mxu0 0.0
  %598 = vmatpush1.msra.mxu0 0.0
  %599 = vmatprep.subr.mxu0 0.0
  %600 = vmatpush1.msra.mxu0 0.0
  %601 = vmatprep.subr.mxu0 0.0
  %602 = vmatpush1.msra.mxu0 0.0
  %603 = vmatprep.subr.mxu0 0.0
  %604 = vmatpush1.msra.mxu0 0.0
  %605 = vmatprep.subr.mxu0 0.0
  %606 = vmatpush1.msra.mxu0 0.0
  %607 = vmatprep.subr.mxu0 0.0
  %608 = vmatpush1.msra.mxu0 0.0
  %609 = vmatprep.subr.mxu0 0.0
  %610 = vmatpush1.msra.mxu0 0.0
  %611 = vmatprep.subr.mxu0 0.0
  %612 = vmatpush1.msra.mxu0 0.0
  %613 = vmatprep.subr.mxu0 0.0
  %614 = vmatpush1.msra.mxu0 0.0
  %615 = vmatprep.subr.mxu0 0.0
  %616 = vmatpush1.msra.mxu0 0.0
  %617 = vmatprep.subr.mxu0 0.0
  %618 = vmatpush1.msra.mxu0 0.0
  %619 = vmatprep.subr.mxu0 0.0
  %620 = vmatpush1.msra.mxu0 0.0
  %621 = vmatprep.mubr.f32.mxu0 0.0
  %v622 = vand.u32 %v21, 4294901760
  %623 = vmatmul.mubr.f32.gmra.mrb[0].mxu0 %v622
  %v624 = vpop.f32.mrb[0].mxu0
  %v625 = vadd.f32 %v532, %v624
  %v626 = vpop.f32.mrb[0].mxu0
  %627 = vmatprep.mubr.f32.mxu0 0.0
  %v628 = vand.u32 %v24, 4294901760
  %629 = vmatmul.mubr.f32.gmra.mrb[0].mxu0 %v628
  %v630 = vpop.f32.mrb[0].mxu0
  %v631 = vadd.f32 %v538, %v630
  %v632 = vpop.f32.mrb[0].mxu0
  %633 = vmatprep.mubr.f32.mxu0 0.0
  %v634 = vand.u32 %v27, 4294901760
  %635 = vmatmul.mubr.f32.gmra.mrb[0].mxu0 %v634
  %v636 = vpop.f32.mrb[0].mxu0
  %v637 = vadd.f32 %v544, %v636
  %v638 = vpop.f32.mrb[0].mxu0
  %639 = vmatprep.mubr.f32.mxu0 0.0
  %v640 = vand.u32 %v30, 4294901760
  %641 = vmatmul.mubr.f32.gmra.mrb[0].mxu0 %v640
  %v642 = vpop.f32.mrb[0].mxu0
  %v643 = vadd.f32 %v550, %v642
  %v644 = vpop.f32.mrb[0].mxu0
  %645 = vdwg.mxu0
  %v646 = vlaneseq
  %v647 = vshrl.u32 %v646, 7
  %v648 = vadd.s32 %v647, 8
  %v649 = vadd.s32 %v647, 16
  %v650 = vadd.s32 %v647, 24
  %vm651 = vcmp.lt.s32.totalorder %v647, 16
  %vm652 = vcmp.lt.s32.totalorder %v648, 16
  %vm653 = vcmp.lt.s32.totalorder %v649, 16
  %vm654 = vcmp.lt.s32.totalorder %v650, 16
  %v655 = vsel %vm651, 1.0, -1.0
  %v656 = vsel %vm652, 1.0, -1.0
  %v657 = vsel %vm653, 1.0, -1.0
  %v658 = vsel %vm654, 1.0, -1.0
  %v659 = vmul.f32 %v655, %v625
  %v660 = vmul.f32 %v656, %v631
  %v661 = vmul.f32 %v657, %v637
  %v662 = vmul.f32 %v658, %v643
  %v663 = vmul.f32 %v659, %v625
  %v664 = vmul.f32 %v660, %v631
  %v665 = vmul.f32 %v661, %v637
  %v666 = vmul.f32 %v662, %v643
  %v667 = vadd.f32 %v663, %v664
  %v668 = vadd.f32 %v667, %v665
  %v669 = vadd.f32 %v668, %v666
  %v670 = vrot.slane %v669, 4
  %v671 = vadd.f32 %v669, %v670
  %v672 = vrot.slane %v671, 2
  %v673 = vadd.f32 %v671, %v672
  %v674 = vrot.slane %v673, 1
  %v675 = vadd.f32 %v673, %v674
  %676 = vst [vmem:[%s2] sm:$0x1] %v675
  // Predicated region
  $region10: #{q_discriminator_forward.1} parent=0 // pred_check
    _
  $region11: #{q_discriminator_forward.1} parent=0 // pred_check_branch
    %678 = sbr.rel (0) target = $region13
  $region12: #{q_discriminator_forward.1} parent=0 // pred_region
    _
  $region13: #{q_discriminator_forward.1} parent=0 // pred_fallthru
    _
  // Predicated region
  $region14: #{q_discriminator_forward.1} parent=0 // pred_check
    _
  $region15: #{q_discriminator_forward.1} parent=0 // pred_check_branch
    %680 = sbr.rel (0) target = $region17
  $region16: #{q_discriminator_forward.1} parent=0 // pred_region
    _
  $region17: #{q_discriminator_forward.1} parent=0 // pred_fallthru
    _

</llo_original>
